<compile_context>
chip_gen: v7x
topology: tpu7x:2x2x1
jax: 0.10.0
libtpu: 0.0.40
codegen_flags: <defaults>
</compile_context>

<pallas_src>
import functools

import jax
import jax.numpy as jnp
from jax.experimental import pallas as pl
from jax.experimental.pallas import tpu as pltpu

BN_EPS = 1e-5
_LANE = 128
_SUBLANE = 8
_BF16_ROWS = 16          # bf16 packs 16 sublanes per vreg
_TARGET_BLOCK_B = 512    # target batch tile (memory-bound sweet spot)


def _round_up(n, m):
    return (n + m - 1) // m * m


def _pad2(a, rows, cols):
    if a.shape == (rows, cols):
        return a
    return jnp.pad(a, ((0, rows - a.shape[0]), (0, cols - a.shape[1])))


def _vmem_limit_bytes():
    """Generation-aware VMEM limit: ~3/4 of physical VMEM, capped at 100 MiB."""
    cap = 64 * 1024 * 1024
    try:
        info = pltpu.get_tpu_info()
        cap = int(getattr(info, "vmem_capacity_bytes", cap) or cap)
    except Exception:
        pass
    return int(min(cap * 3 // 4, 100 * 1024 * 1024))


def _pick_block_b(batch, d_in_p, f1_p, h_p, c_p, vmem_limit):
    """Largest 16-aligned batch tile whose double-buffered working set fits."""
    bb = min(_TARGET_BLOCK_B, _round_up(batch, _BF16_ROWS))

    def usage(bb):
        pass1 = (2 * bb * d_in_p * 4        # x tiles (f32, double-buffered)
                 + 2 * d_in_p * f1_p * 2    # W1 (bf16)
                 + 2 * bb * f1_p * 2        # h1 out tiles (bf16)
                 + 2 * _SUBLANE * f1_p * 4) # partial-stat tiles
        pass2 = (2 * bb * f1_p * 2          # h1 in tiles (bf16)
                 + 2 * (f1_p * h_p + h_p * c_p) * 2   # W2, W3 (bf16)
                 + 2 * bb * c_p * 4         # out tiles (f32)
                 + 8 * (f1_p + h_p + c_p) * 4)        # small affine params
        return max(pass1, pass2)

    while bb > _BF16_ROWS and usage(bb) > int(vmem_limit * 0.8):
        bb = _round_up(bb // 2, _BF16_ROWS)
    return max(bb, _BF16_ROWS)


# ---------------------------------------------------------------------------
# Pass 1: h1 = x @ W1 + b1 (bf16 writeback) + per-tile BN partial stats.
# ---------------------------------------------------------------------------
def _linear_stats_kernel(x_ref, w1_ref, b1_ref, h1_ref, stats_ref, *,
                         block_b, batch):
    i = pl.program_id(0)

    # f32 x tile, cast to bf16 on the VPU (avoids a separate XLA cast pass).
    x = x_ref[...].astype(jnp.bfloat16)
    h1 = jnp.dot(x, w1_ref[...], preferred_element_type=jnp.float32) + b1_ref[...]
    h1_ref[...] = h1.astype(h1_ref.dtype)          # bf16 writeback

    # Per-tile partial stats (f32); mask padded batch rows (last tile only).
    row = i * block_b + jax.lax.broadcasted_iota(jnp.int32, h1.shape, 0)
    h1m = jnp.where(row < batch, h1, 0.0)
    stats_ref[...] = jnp.zeros_like(stats_ref)
    stats_ref[0:1, :] = jnp.sum(h1m, axis=0, keepdims=True)
    stats_ref[1:2, :] = jnp.sum(h1m * h1m, axis=0, keepdims=True)


# ---------------------------------------------------------------------------
# Pass 2: fused BN FMA -> ReLU -> Linear -> ReLU -> Linear -> LogSoftmax.
# ---------------------------------------------------------------------------
def _bn_mlp_logsoftmax_kernel(h1_ref, scale_ref, shift_ref, w2_ref, b2_ref,
                              w3_ref, b3_ref, out_ref, *, num_classes):
    # BN (precomputed scale/shift) + ReLU in f32.
    h1 = jnp.maximum(h1_ref[...].astype(jnp.float32) * scale_ref[...]
                     + shift_ref[...], 0.0)

    # Linear(300 -> hidden) + ReLU  (bf16 MXU, f32 accumulate).
    h2 = jnp.dot(h1.astype(jnp.bfloat16), w2_ref[...],
                 preferred_element_type=jnp.float32) + b2_ref[...]
    h2 = jnp.maximum(h2, 0.0)

    # Linear(hidden -> num_classes).
    h3 = jnp.dot(h2.astype(jnp.bfloat16), w3_ref[...],
                 preferred_element_type=jnp.float32) + b3_ref[...]

    # Mask padded class lanes, then numerically stable log-softmax.
    lane = jax.lax.broadcasted_iota(jnp.int32, h3.shape, 1)
    h3 = jnp.where(lane < num_classes, h3, -1e30)
    m = jnp.max(h3, axis=-1, keepdims=True)
    z = h3 - m
    lse = jnp.log(jnp.sum(jnp.exp(z), axis=-1, keepdims=True))
    out_ref[...] = (z - lse).astype(out_ref.dtype)


# ---------------------------------------------------------------------------
# Parameter preparation (pad + cast ONCE, not per forward call).
# ---------------------------------------------------------------------------
def prepare_params(params):
    w1, b1, gamma, beta, w2, b2, w3, b3 = params
    d_in, f1 = w1.shape
    hidden = w2.shape[1]
    num_classes = w3.shape[1]
    d_in_p = _round_up(d_in, _LANE)
    f1_p = _round_up(f1, _LANE)        # 300 -> 384
    h_p = _round_up(hidden, _LANE)
    c_p = _round_up(num_classes, _LANE)
    return {
        "w1": _pad2(w1, d_in_p, f1_p).astype(jnp.bfloat16),
        "b1": _pad2(b1, 1, f1_p).astype(jnp.float32),
        "gamma": _pad2(gamma, 1, f1_p).astype(jnp.float32),
        "beta": _pad2(beta, 1, f1_p).astype(jnp.float32),
        "w2": _pad2(w2, f1_p, h_p).astype(jnp.bfloat16),
        "b2": _pad2(b2, 1, h_p).astype(jnp.float32),
        "w3": _pad2(w3, h_p, c_p).astype(jnp.bfloat16),
        "b3": _pad2(b3, 1, c_p).astype(jnp.float32),
        "dims": (d_in, f1, hidden, num_classes),
    }


# ---------------------------------------------------------------------------
# Forward wrapper.
# ---------------------------------------------------------------------------
def domain_classifier_forward(x, prepared):
    """x: [B, input_size] f32. Returns log-probabilities [B, num_classes]."""
    batch, d_in = x.shape
    d_in_p, f1_p = prepared["w1"].shape
    h_p = prepared["w2"].shape[1]
    c_p = prepared["w3"].shape[1]
    _, _, _, num_classes = prepared["dims"]

    vmem_limit = _vmem_limit_bytes()
    block_b = _pick_block_b(batch, d_in_p, f1_p, h_p, c_p, vmem_limit)
    b_p = _round_up(batch, block_b)
    nb = b_p // block_b

    # Pad x only when required; kept f32 (cast to bf16 inside pass 1).
    x_p = _pad2(x.astype(jnp.float32), b_p, d_in_p)

    tile = lambda i: (i, 0)     # batch-tiled activations / per-tile stats
    const = lambda i: (0, 0)    # VMEM-resident weights / affine params

    # TODO(synk): for very large input_size add an inner "arbitrary" K axis
    # tiling d_in_p / W1 (and pl.Buffered(3) on the x spec) so the
    # W1-resident strategy stays within v7x's 64 MiB VMEM.

    # ---- Pass 1: Linear(input -> 300) + per-tile BN partial stats ----------
    h1_bf16, stats = pl.pallas_call(
        functools.partial(_linear_stats_kernel, block_b=block_b, batch=batch),
        grid=(nb,),
        in_specs=[
            pl.BlockSpec((block_b, d_in_p), tile),
            pl.BlockSpec((d_in_p, f1_p), const),
            pl.BlockSpec((1, f1_p), const),
        ],
        out_specs=[
            pl.BlockSpec((block_b, f1_p), tile),
            pl.BlockSpec((_SUBLANE, f1_p), tile),     # per-tile partial stats
        ],
        out_shape=[
            jax.ShapeDtypeStruct((b_p, f1_p), jnp.bfloat16),
            jax.ShapeDtypeStruct((nb * _SUBLANE, f1_p), jnp.float32),
        ],
        compiler_params=pltpu.CompilerParams(
            dimension_semantics=("parallel",),
            vmem_limit_bytes=vmem_limit),
        cost_estimate=pl.CostEstimate(
            flops=int(2 * b_p * d_in_p * f1_p),
            transcendentals=0,
            bytes_accessed=int(b_p * d_in_p * 4 + d_in_p * f1_p * 2
                               + f1_p * 4 + b_p * f1_p * 2
                               + nb * _SUBLANE * f1_p * 4)),
    )(x_p, prepared["w1"], prepared["b1"])

    # ---- BN finalize (tiny, once, in plain JAX — off the per-tile path) ----
    stats = stats.reshape(nb, _SUBLANE, f1_p)
    mean = jnp.sum(stats[:, 0, :], axis=0, keepdims=True) / batch
    ex2 = jnp.sum(stats[:, 1, :], axis=0, keepdims=True) / batch
    var = jnp.maximum(ex2 - mean * mean, 0.0)
    scale = prepared["gamma"] * jax.lax.rsqrt(var + BN_EPS)
    shift = prepared["beta"] - mean * scale

    # ---- Pass 2: BN -> ReLU -> Linear -> ReLU -> Linear -> LogSoftmax ------
    out_p = pl.pallas_call(
        functools.partial(_bn_mlp_logsoftmax_kernel, num_classes=num_classes),
        grid=(nb,),
        in_specs=[
            pl.BlockSpec((block_b, f1_p), tile),      # h1 (bf16)
            pl.BlockSpec((1, f1_p), const),           # BN scale
            pl.BlockSpec((1, f1_p), const),           # BN shift
            pl.BlockSpec((f1_p, h_p), const),         # W2
            pl.BlockSpec((1, h_p), const),            # b2
            pl.BlockSpec((h_p, c_p), const),          # W3
            pl.BlockSpec((1, c_p), const),            # b3
        ],
        out_specs=pl.BlockSpec((block_b, c_p), tile),
        out_shape=jax.ShapeDtypeStruct((b_p, c_p), jnp.float32),
        compiler_params=pltpu.CompilerParams(
            dimension_semantics=("parallel",),
            vmem_limit_bytes=vmem_limit),
        cost_estimate=pl.CostEstimate(
            flops=int(2 * b_p * (f1_p * h_p + h_p * c_p)),
            transcendentals=int(b_p * (c_p + 1)),
            bytes_accessed=int(b_p * f1_p * 2 + (f1_p * h_p + h_p * c_p) * 2
                               + b_p * c_p * 4 + 4 * f1_p * 4
                               + (h_p + c_p) * 4)),
    )(h1_bf16, scale, shift, prepared["w2"], prepared["b2"],
      prepared["w3"], prepared["b3"])

    # Strip batch / class padding outside the kernel.
    return out_p[:batch, :num_classes]


# ---------------------------------------------------------------------------
# Parameters and references.
# ---------------------------------------------------------------------------
def init_params(key, input_size, hidden_size, num_classes):
    """Deterministic synthetic parameters; weights are [in, out] (transpose of
    PyTorch's nn.Linear weight), biases / BN params are [1, out]."""
    k = jax.random.split(key, 8)
    s = 0.05
    w1 = s * jax.random.normal(k[0], (input_size, 300), jnp.float32)
    b1 = s * jax.random.normal(k[1], (1, 300), jnp.float32)
    gamma = 1.0 + 0.1 * jax.random.normal(k[2], (1, 300), jnp.float32)
    beta = 0.1 * jax.random.normal(k[3], (1, 300), jnp.float32)
    w2 = s * jax.random.normal(k[4], (300, hidden_size), jnp.float32)
    b2 = s * jax.random.normal(k[5], (1, hidden_size), jnp.float32)
    w3 = s * jax.random.normal(k[6], (hidden_size, num_classes), jnp.float32)
    b3 = s * jax.random.normal(k[7], (1, num_classes), jnp.float32)
    return (w1, b1, gamma, beta, w2, b2, w3, b3)


def reference_forward_f32(x, params):
    """Pure-f32 reference with the original module semantics (training-mode BN)."""
    w1, b1, gamma, beta, w2, b2, w3, b3 = params
    h1 = x @ w1 + b1
    mean = jnp.mean(h1, axis=0, keepdims=True)
    var = jnp.mean((h1 - mean) ** 2, axis=0, keepdims=True)
    h1 = jnp.maximum((h1 - mean) / jnp.sqrt(var + BN_EPS) * gamma + beta, 0.0)
    h2 = jnp.maximum(h1 @ w2 + b2, 0.0)
    h3 = h2 @ w3 + b3
    return jax.nn.log_softmax(h3, axis=-1)


def reference_forward_matched(x, params):
    """Reference mirroring the kernel numerics (bf16 MXU operands, f32
    accumulation, f32 sum/sumsq variance, bf16-stored h1 intermediate)."""
    w1, b1, gamma, beta, w2, b2, w3, b3 = params
    bf = lambda a: a.astype(jnp.bfloat16)
    dot = lambda a, b: jnp.dot(bf(a), bf(b), preferred_element_type=jnp.float32)
    batch = x.shape[0]
    h1 = dot(x, w1) + b1
    mean = jnp.sum(h1, axis=0, keepdims=True) / batch
    var = jnp.maximum(jnp.sum(h1 * h1, axis=0, keepdims=True) / batch
                      - mean * mean, 0.0)
    scale = gamma * jax.lax.rsqrt(var + BN_EPS)
    shift = beta - mean * scale
    h1b = h1.astype(jnp.bfloat16).astype(jnp.float32)   # bf16 h1 round-trip
    h1a = jnp.maximum(h1b * scale + shift, 0.0)
    h2 = jnp.maximum(dot(h1a, w2) + b2, 0.0)
    h3 = dot(h2, w3) + b3
    return jax.nn.log_softmax(h3, axis=-1)


if __name__ == "__main__":
    B = 8
    input_size = 32
    hidden_size = 32
    num_classes = 8

    key = jax.random.PRNGKey(0)
    kx, kp = jax.random.split(key)
    x = jax.random.normal(kx, (B, input_size), jnp.float32)
    params = init_params(kp, input_size, hidden_size, num_classes)

    prepared = prepare_params(params)   # pad + cast weights once
    out = jax.block_until_ready(domain_classifier_forward(x, prepared))
    assert out.shape == (B, num_classes)

    ref_tight = reference_forward_matched(x, params)
    ref_f32 = reference_forward_f32(x, params)
    assert jnp.allclose(out, ref_tight, atol=2e-3, rtol=2e-3), \
        "mismatch vs bf16-matched reference"
    assert jnp.allclose(out, ref_f32, atol=5e-2, rtol=5e-2), \
        "mismatch vs f32 reference"

    print("KERNEL_OK")
</pallas_src>

<mosaic_0001>
module attributes {stable_mosaic.version = 11 : i64} {
  func.func @_linear_stats_kernel(%arg0: i32, %arg1: memref<16x128xf32, #tpu.memory_space<vmem>>, %arg2: memref<128x384xbf16, #tpu.memory_space<vmem>>, %arg3: memref<1x384xf32, #tpu.memory_space<vmem>>, %arg4: memref<16x384xbf16, #tpu.memory_space<vmem>>, %arg5: memref<8x384xf32, #tpu.memory_space<vmem>>) attributes {dimension_semantics = [#tpu.dimension_semantics<parallel>], iteration_bounds = array<i64: 1>, scalar_prefetch = 0 : i64, scratch_operands = 0 : i64, tpu.core_type = #tpu.core_type<tc>, window_params = [{transform_indices = @transform_0, window_bounds = array<i64: 16, 128>}, {pipeline_mode = #tpu.pipeline_mode<synchronous>, transform_indices = @transform_1, window_bounds = array<i64: 128, 384>}, {pipeline_mode = #tpu.pipeline_mode<synchronous>, transform_indices = @transform_2, window_bounds = array<i64: 1, 384>}, {transform_indices = @transform_3, window_bounds = array<i64: 16, 384>}, {transform_indices = @transform_4, window_bounds = array<i64: 8, 384>}]} {
    %c0 = arith.constant 0 : index
    %c0_0 = arith.constant 0 : index
    %0 = vector.load %arg1[%c0, %c0_0] : memref<16x128xf32, #tpu.memory_space<vmem>>, vector<16x128xf32>
    %1 = arith.truncf %0 : vector<16x128xf32> to vector<16x128xbf16>
    %c0_1 = arith.constant 0 : index
    %c0_2 = arith.constant 0 : index
    %2 = vector.load %arg2[%c0_1, %c0_2] : memref<128x384xbf16, #tpu.memory_space<vmem>>, vector<128x384xbf16>
    %cst = arith.constant dense<0.000000e+00> : vector<16x384xf32>
    %3 = tpu.matmul %1, %2, %cst {dimension_numbers = #tpu.dot_dimension_numbers<[1], [0], [0], [1], [0, 0, 1, 1], [], []>} : vector<16x128xbf16>, vector<128x384xbf16>, vector<16x384xf32> -> vector<16x384xf32>
    %c0_3 = arith.constant 0 : index
    %c0_4 = arith.constant 0 : index
    %4 = vector.load %arg3[%c0_3, %c0_4] : memref<1x384xf32, #tpu.memory_space<vmem>>, vector<1x384xf32>
    %5 = vector.broadcast %4 : vector<1x384xf32> to vector<16x384xf32>
    %6 = arith.addf %3, %5 : vector<16x384xf32>
    %7 = arith.truncf %6 : vector<16x384xf32> to vector<16x384xbf16>
    %c0_5 = arith.constant 0 : index
    %c0_6 = arith.constant 0 : index
    %8 = vector.load %arg4[%c0_5, %c0_6] : memref<16x384xbf16, #tpu.memory_space<vmem>>, vector<16x384xbf16>
    tpu.vector_store %arg4[%c0_5, %c0_6], %7 {strides = array<i32>} : memref<16x384xbf16, #tpu.memory_space<vmem>>, vector<16x384xbf16>,
    %c16_i32 = arith.constant 16 : i32
    %9 = arith.muli %arg0, %c16_i32 : i32
    %10 = tpu.iota {dimensions = array<i32: 0>} : vector<16x384xi32>
    %11 = vector.broadcast %9 : i32 to vector<16x384xi32>
    %12 = arith.addi %11, %10 : vector<16x384xi32>
    %c8_i32 = arith.constant 8 : i32
    %13 = vector.broadcast %c8_i32 : i32 to vector<16x384xi32>
    %14 = arith.cmpi slt, %12, %13 : vector<16x384xi32>
    %cst_7 = arith.constant 0.000000e+00 : f32
    %15 = vector.broadcast %cst_7 : f32 to vector<16x384xf32>
    %16 = arith.select %14, %6, %15 : vector<16x384xi1>, vector<16x384xf32>
    %cst_8 = arith.constant 0.000000e+00 : f32
    %17 = vector.broadcast %cst_8 : f32 to vector<8x384xf32>
    %c0_9 = arith.constant 0 : index
    %c0_10 = arith.constant 0 : index
    %18 = vector.load %arg5[%c0_9, %c0_10] : memref<8x384xf32, #tpu.memory_space<vmem>>, vector<8x384xf32>
    tpu.vector_store %arg5[%c0_9, %c0_10], %17 {strides = array<i32>} : memref<8x384xf32, #tpu.memory_space<vmem>>, vector<8x384xf32>,
    %cst_11 = arith.constant dense<0.000000e+00> : vector<384xf32>
    %19 = vector.multi_reduction <add>, %16, %cst_11 [0] : vector<16x384xf32> to vector<384xf32>
    %20 = vector.shape_cast %19 : vector<384xf32> to vector<1x384xf32>
    %c0_12 = arith.constant 0 : index
    %c0_13 = arith.constant 0 : index
    %21 = vector.load %arg5[%c0_12, %c0_13] : memref<8x384xf32, #tpu.memory_space<vmem>>, vector<1x384xf32>
    tpu.vector_store %arg5[%c0_12, %c0_13], %20 {strides = array<i32>} : memref<8x384xf32, #tpu.memory_space<vmem>>, vector<1x384xf32>,
    %22 = arith.mulf %16, %16 : vector<16x384xf32>
    %cst_14 = arith.constant dense<0.000000e+00> : vector<384xf32>
    %23 = vector.multi_reduction <add>, %22, %cst_14 [0] : vector<16x384xf32> to vector<384xf32>
    %24 = vector.shape_cast %23 : vector<384xf32> to vector<1x384xf32>
    %c1 = arith.constant 1 : index
    %c0_15 = arith.constant 0 : index
    %25 = vector.load %arg5[%c1, %c0_15] : memref<8x384xf32, #tpu.memory_space<vmem>>, vector<1x384xf32>
    tpu.vector_store %arg5[%c1, %c0_15], %24 {strides = array<i32>} : memref<8x384xf32, #tpu.memory_space<vmem>>, vector<1x384xf32>,
    return
  }
  func.func @transform_0(%arg0: i32) -> (i32, i32) {
    %c0_i32 = arith.constant 0 : i32
    %c0_i32_0 = arith.constant 0 : i32
    return %arg0, %c0_i32 : i32, i32
  }
  func.func @transform_1(%arg0: i32) -> (i32, i32) {
    %c0_i32 = arith.constant 0 : i32
    %c0_i32_0 = arith.constant 0 : i32
    %c0_i32_1 = arith.constant 0 : i32
    return %c0_i32, %c0_i32_0 : i32, i32
  }
  func.func @transform_2(%arg0: i32) -> (i32, i32) {
    %c0_i32 = arith.constant 0 : i32
    %c0_i32_0 = arith.constant 0 : i32
    %c0_i32_1 = arith.constant 0 : i32
    return %c0_i32, %c0_i32_0 : i32, i32
  }
  func.func @transform_3(%arg0: i32) -> (i32, i32) {
    %c0_i32 = arith.constant 0 : i32
    %c0_i32_0 = arith.constant 0 : i32
    return %arg0, %c0_i32 : i32, i32
  }
  func.func @transform_4(%arg0: i32) -> (i32, i32) {
    %c0_i32 = arith.constant 0 : i32
    %c0_i32_0 = arith.constant 0 : i32
    return %arg0, %c0_i32 : i32, i32
  }
}

</mosaic_0001>

<llo_original>
// kernel: tpu_custom_call.1
$region0: #{tpu_custom_call.1}
  #allocation0 [shape = 'u32[]', space=smem, size = 0x4, offset = 0x4, fixed_abs, tag = 'smem constant byte address 0x4 - core index']
  #allocation1 [shape = 'u32[144,128]{1,0:T(1,128)}', space=vmem, size = 0x12000, scoped, tag = 'internal scratch']
  %s0 = inlined_call_operand.hbm [shape: f32[16,128], index: 0, kind: input, shape index: {}]
  %s1 = inlined_call_operand.hbm [shape: bf16[128,384], index: 1, kind: input, shape index: {}]
  %s2 = inlined_call_operand.vmem [shape: f32[1,384], index: 2, kind: input, shape index: {}]
  %s3 = inlined_call_operand.hbm [shape: bf16[16,384], index: 3, kind: output, shape index: {0}]
  %s4 = inlined_call_operand.hbm [shape: f32[8,384], index: 4, kind: output, shape index: {1}]
  %5 = xla_tuple %s3, %s4
  %s6 = sld [smem:[#allocation0]]
  $region38: #{tpu_custom_call.1} parent=0
    _
  %s8 = ssub.s32 1, %s6
  %s9 = scalar_select 0, %s8, %s6
  $region1: #{tpu_custom_call.1} parent=0
    #allocation2 [shape = 'u8[8192]{0}', space=vmem, size = 0x2000, scoped, tag = 'input window, operand 0, single buffered']
    #allocation3 [shape = 's32[1]{0}', space=sflag, size = 0x4, scoped, tag = 'scoped memory for tpu_custom_call.1']
    #allocation4 [shape = 's32[1]{0}', space=sflag, size = 0x4, scoped, tag = 'scoped memory for tpu_custom_call.1']
    #allocation5 [shape = 'u8[98304]{0}', space=vmem, size = 0x18000, scoped, tag = 'input window, operand 1, single buffered']
    #allocation6 [shape = 's32[1]{0}', space=sflag, size = 0x4, scoped, tag = 'scoped memory for tpu_custom_call.1']
    #allocation7 [shape = 'u8[12288]{0}', space=vmem, size = 0x3000, scoped, tag = 'output window, operand 0, single buffered']
    #allocation8 [shape = 'u8[12288]{0}', space=vmem, size = 0x3000, scoped, tag = 'output window, operand 1, single buffered']
    #allocation9 [shape = 's32[1]{0}', space=sflag, size = 0x4, scoped, tag = 'scoped memory for tpu_custom_call.1']
    %10 = vsyncpa [#allocation3], 0
    %11 = vsyncpa [#allocation6], 0
    %12 = vsyncpa [#allocation4], 0
    %13 = vsyncpa [#allocation9], 0
    // Predicated region
    $region2: #{tpu_custom_call.1} parent=1 // pred_check
      _
    $region3: #{tpu_custom_call.1} parent=1 // pred_check_branch
      %15 = sbr.rel (0) target = $region5
    $region4: #{tpu_custom_call.1} parent=1 // pred_region
      %s17 = ssub.s32 256, 256
      %18 = vsyncadd [#allocation3], %s17
      %s19 = sshll.u32 [#allocation2], 4
      %s20 = int_to_ptr.vmem [resolvable:$true] %s19
      %25 = dma.hbm_to_vmem [thread:$0]  %s0, 256, %s20, [#allocation3], 128, 128, 8
    $region5: #{tpu_custom_call.1} parent=1 // pred_fallthru
      _
    // Predicated region
    $region6: #{tpu_custom_call.1} parent=1 // pred_check
      _
    $region7: #{tpu_custom_call.1} parent=1 // pred_check_branch
      %27 = sbr.rel (0) target = $region9
    $region8: #{tpu_custom_call.1} parent=1 // pred_region
      %s29 = ssub.s32 3072, 3072
      %30 = vsyncadd [#allocation6], %s29
      %s31 = sshll.u32 [#allocation5], 4
      %s32 = int_to_ptr.vmem [resolvable:$true] %s31
      %37 = dma.hbm_to_vmem [thread:$0]  %s1, 3072, %s32, [#allocation6], 192, 192, 12
    $region9: #{tpu_custom_call.1} parent=1 // pred_fallthru
      _
    // Predicated region
    $region10: #{tpu_custom_call.1} parent=1 // pred_check
      _
    $region11: #{tpu_custom_call.1} parent=1 // pred_check_branch
      %39 = sbr.rel (0) target = $region13
    $region12: #{tpu_custom_call.1} parent=1 // pred_region
      _
    $region13: #{tpu_custom_call.1} parent=1 // pred_fallthru
      _
    // Predicated region
    $region14: #{tpu_custom_call.1} parent=1 // pred_check
      _
    $region15: #{tpu_custom_call.1} parent=1 // pred_check_branch
      %41 = sbr.rel (0) target = $region17
    $region16: #{tpu_custom_call.1} parent=1 // pred_region
      %42 = dma.done [#allocation3], 256
    $region17: #{tpu_custom_call.1} parent=1 // pred_fallthru
      _
    // Predicated region
    $region18: #{tpu_custom_call.1} parent=1 // pred_check
      _
    $region19: #{tpu_custom_call.1} parent=1 // pred_check_branch
      %44 = sbr.rel (0) target = $region21
    $region20: #{tpu_custom_call.1} parent=1 // pred_region
      %45 = dma.done [#allocation6], 3072
    $region21: #{tpu_custom_call.1} parent=1 // pred_fallthru
      _
    %v47 = vld [vmem:[#allocation2] sm:$0xff]
    %v48 = vld [vmem:[#allocation2 + $0x8] sm:$0xff]
    %v49 = vpack.c.bf16 %v48, %v47
    %v50 = vld [vmem:[#allocation5] sm:$0xff]
    %v51 = vld [vmem:[#allocation5 + $0x8] sm:$0xf]
    %v52 = vld [vmem:[#allocation5 + $0xc] sm:$0xff]
    %v53 = vld [vmem:[#allocation5 + $0x14] sm:$0xf]
    %v54 = vld [vmem:[#allocation5 + $0x18] sm:$0xff]
    %v55 = vld [vmem:[#allocation5 + $0x20] sm:$0xf]
    %v56 = vld [vmem:[#allocation5 + $0x24] sm:$0xff]
    %v57 = vld [vmem:[#allocation5 + $0x2c] sm:$0xf]
    %v58 = vld [vmem:[#allocation5 + $0x30] sm:$0xff]
    %v59 = vld [vmem:[#allocation5 + $0x38] sm:$0xf]
    %v60 = vld [vmem:[#allocation5 + $0x3c] sm:$0xff]
    %v61 = vld [vmem:[#allocation5 + $0x44] sm:$0xf]
    %v62 = vld [vmem:[#allocation5 + $0x48] sm:$0xff]
    %v63 = vld [vmem:[#allocation5 + $0x50] sm:$0xf]
    %v64 = vld [vmem:[#allocation5 + $0x54] sm:$0xff]
    %v65 = vld [vmem:[#allocation5 + $0x5c] sm:$0xf]
    %v66 = vld [vmem:[#allocation5 + $0x60] sm:$0xff]
    %v67 = vld [vmem:[#allocation5 + $0x68] sm:$0xf]
    %v68 = vld [vmem:[#allocation5 + $0x6c] sm:$0xff]
    %v69 = vld [vmem:[#allocation5 + $0x74] sm:$0xf]
    %v70 = vld [vmem:[#allocation5 + $0x78] sm:$0xff]
    %v71 = vld [vmem:[#allocation5 + $0x80] sm:$0xf]
    %v72 = vld [vmem:[#allocation5 + $0x84] sm:$0xff]
    %v73 = vld [vmem:[#allocation5 + $0x8c] sm:$0xf]
    %v74 = vld [vmem:[#allocation5 + $0x90] sm:$0xff]
    %v75 = vld [vmem:[#allocation5 + $0x98] sm:$0xf]
    %v76 = vld [vmem:[#allocation5 + $0x9c] sm:$0xff]
    %v77 = vld [vmem:[#allocation5 + $0xa4] sm:$0xf]
    %v78 = vld [vmem:[#allocation5 + $0xa8] sm:$0xff]
    %v79 = vld [vmem:[#allocation5 + $0xb0] sm:$0xf]
    %v80 = vld [vmem:[#allocation5 + $0xb4] sm:$0xff]
    %v81 = vld [vmem:[#allocation5 + $0xbc] sm:$0xf]
    %v82 = vld [vmem:[%s2] sm:$0x7]
    %v84 = vlaneseq
    %v85 = vshrl.u32 %v84, 7
    %v86 = vsub.s32 0, %v85
    %v87 = vrot.slane %v82, %v86
    %v88 = vlaneseq
    %v89 = vshrl.u32 %v88, 7
    %v90 = vsub.s32 1, %v89
    %v91 = vrot.slane %v82, %v90
    %v92 = vlaneseq
    %v93 = vshrl.u32 %v92, 7
    %v94 = vsub.s32 2, %v93
    %v95 = vrot.slane %v82, %v94
    %v131 = vunpack.c.l.b16 %v50
    %v132 = vunpack.c.h.b16 %v50
    %v133 = vunpack.c.l.b16 %v51
    %v134 = vunpack.c.l.b16 %v52
    %v135 = vunpack.c.h.b16 %v52
    %v136 = vunpack.c.l.b16 %v53
    %v137 = vunpack.c.l.b16 %v54
    %v138 = vunpack.c.h.b16 %v54
    %v139 = vunpack.c.l.b16 %v55
    %v140 = vunpack.c.l.b16 %v56
    %v141 = vunpack.c.h.b16 %v56
    %v142 = vunpack.c.l.b16 %v57
    %v143 = vunpack.c.l.b16 %v58
    %v144 = vunpack.c.h.b16 %v58
    %v145 = vunpack.c.l.b16 %v59
    %v146 = vunpack.c.l.b16 %v60
    %v147 = vunpack.c.h.b16 %v60
    %v148 = vunpack.c.l.b16 %v61
    %v149 = vunpack.c.l.b16 %v62
    %v150 = vunpack.c.h.b16 %v62
    %v151 = vunpack.c.l.b16 %v63
    %v152 = vunpack.c.l.b16 %v64
    %v153 = vunpack.c.h.b16 %v64
    %v154 = vunpack.c.l.b16 %v65
    %v155 = vunpack.c.l.b16 %v66
    %v156 = vunpack.c.h.b16 %v66
    %v157 = vunpack.c.l.b16 %v67
    %v158 = vunpack.c.l.b16 %v68
    %v159 = vunpack.c.h.b16 %v68
    %v160 = vunpack.c.l.b16 %v69
    %v161 = vunpack.c.l.b16 %v70
    %v162 = vunpack.c.h.b16 %v70
    %v163 = vunpack.c.l.b16 %v71
    %v164 = vunpack.c.l.b16 %v72
    %v165 = vunpack.c.h.b16 %v72
    %v166 = vunpack.c.l.b16 %v73
    %v167 = vunpack.c.l.b16 %v74
    %v168 = vunpack.c.h.b16 %v74
    %v169 = vunpack.c.l.b16 %v75
    %v170 = vunpack.c.l.b16 %v76
    %v171 = vunpack.c.h.b16 %v76
    %v172 = vunpack.c.l.b16 %v77
    %v173 = vunpack.c.l.b16 %v78
    %v174 = vunpack.c.h.b16 %v78
    %v175 = vunpack.c.l.b16 %v79
    %v176 = vunpack.c.l.b16 %v80
    %v177 = vunpack.c.h.b16 %v80
    %v178 = vunpack.c.l.b16 %v81
    %v179 = vpack.c.b16 %v134, %v131
    %v180 = vpack.c.b16 %v135, %v132
    %v181 = vpack.c.b16 %v136, %v133
    %v182 = vpack.c.b16 %v140, %v137
    %v183 = vpack.c.b16 %v141, %v138
    %v184 = vpack.c.b16 %v142, %v139
    %v185 = vpack.c.b16 %v146, %v143
    %v186 = vpack.c.b16 %v147, %v144
    %v187 = vpack.c.b16 %v148, %v145
    %v188 = vpack.c.b16 %v152, %v149
    %v189 = vpack.c.b16 %v153, %v150
    %v190 = vpack.c.b16 %v154, %v151
    %v191 = vpack.c.b16 %v158, %v155
    %v192 = vpack.c.b16 %v159, %v156
    %v193 = vpack.c.b16 %v160, %v157
    %v194 = vpack.c.b16 %v164, %v161
    %v195 = vpack.c.b16 %v165, %v162
    %v196 = vpack.c.b16 %v166, %v163
    %v197 = vpack.c.b16 %v170, %v167
    %v198 = vpack.c.b16 %v171, %v168
    %v199 = vpack.c.b16 %v172, %v169
    %v200 = vpack.c.b16 %v176, %v173
    %v201 = vpack.c.b16 %v177, %v174
    %v202 = vpack.c.b16 %v178, %v175
    %227 = vmatprep.subr.bf16.mxu0 %v180
    %228 = vmatpush1.bf16.msra.mxu0 %v179
    %229 = vmatprep.subr.bf16.mxu0 %v183
    %230 = vmatpush1.bf16.msra.mxu0 %v182
    %231 = vmatprep.subr.bf16.mxu0 %v186
    %232 = vmatpush1.bf16.msra.mxu0 %v185
    %233 = vmatprep.subr.bf16.mxu0 %v189
    %234 = vmatpush1.bf16.msra.mxu0 %v188
    %235 = vmatprep.subr.bf16.mxu0 %v192
    %236 = vmatpush1.bf16.msra.mxu0 %v191
    %237 = vmatprep.subr.bf16.mxu0 %v195
    %238 = vmatpush1.bf16.msra.mxu0 %v194
    %239 = vmatprep.subr.bf16.mxu0 %v198
    %240 = vmatpush1.bf16.msra.mxu0 %v197
    %241 = vmatprep.subr.bf16.mxu0 %v201
    %242 = vmatpush1.bf16.msra.mxu0 %v200
    %243 = vmatprep.subr.bf16.mxu0 0
    %244 = vmatpush1.bf16.msra.mxu0 0
    %245 = vmatprep.subr.bf16.mxu0 0
    %246 = vmatpush1.bf16.msra.mxu0 0
    %247 = vmatprep.subr.bf16.mxu0 0
    %248 = vmatpush1.bf16.msra.mxu0 0
    %249 = vmatprep.subr.bf16.mxu0 0
    %250 = vmatpush1.bf16.msra.mxu0 0
    %251 = vmatprep.subr.bf16.mxu0 0
    %252 = vmatpush1.bf16.msra.mxu0 0
    %253 = vmatprep.subr.bf16.mxu0 0
    %254 = vmatpush1.bf16.msra.mxu0 0
    %255 = vmatprep.subr.bf16.mxu0 0
    %256 = vmatpush1.bf16.msra.mxu0 0
    %257 = vmatprep.subr.bf16.mxu0 0
    %258 = vmatpush1.bf16.msra.mxu0 0
    %259 = vmatprep.mubr.bf16.mxu0 0
    %260 = vmatmul.mubr.bf16.gmra.mrb[0].mxu0 %v49
    %v261 = vpop.f32.mrb[0].mxu0
    %v262 = vadd.f32 %v87, %v261
    %v263 = vpop.f32.mrb[0].mxu0
    %v264 = vadd.f32 %v91, %v263
    %v265 = vpop.f32.mrb[0].mxu0
    %v266 = vadd.f32 %v87, %v265
    %v267 = vpop.f32.mrb[0].mxu0
    %v268 = vadd.f32 %v91, %v267
    %269 = vdwg.mxu0
    %270 = vmatprep.subr.bf16.mxu0 0
    %271 = vmatpush1.bf16.msra.mxu0 %v181
    %272 = vmatprep.subr.bf16.mxu0 0
    %273 = vmatpush1.bf16.msra.mxu0 %v184
    %274 = vmatprep.subr.bf16.mxu0 0
    %275 = vmatpush1.bf16.msra.mxu0 %v187
    %276 = vmatprep.subr.bf16.mxu0 0
    %277 = vmatpush1.bf16.msra.mxu0 %v190
    %278 = vmatprep.subr.bf16.mxu0 0
    %279 = vmatpush1.bf16.msra.mxu0 %v193
    %280 = vmatprep.subr.bf16.mxu0 0
    %281 = vmatpush1.bf16.msra.mxu0 %v196
    %282 = vmatprep.subr.bf16.mxu0 0
    %283 = vmatpush1.bf16.msra.mxu0 %v199
    %284 = vmatprep.subr.bf16.mxu0 0
    %285 = vmatpush1.bf16.msra.mxu0 %v202
    %286 = vmatprep.subr.bf16.mxu0 0
    %287 = vmatpush1.bf16.msra.mxu0 0
    %288 = vmatprep.subr.bf16.mxu0 0
    %289 = vmatpush1.bf16.msra.mxu0 0
    %290 = vmatprep.subr.bf16.mxu0 0
    %291 = vmatpush1.bf16.msra.mxu0 0
    %292 = vmatprep.subr.bf16.mxu0 0
    %293 = vmatpush1.bf16.msra.mxu0 0
    %294 = vmatprep.subr.bf16.mxu0 0
    %295 = vmatpush1.bf16.msra.mxu0 0
    %296 = vmatprep.subr.bf16.mxu0 0
    %297 = vmatpush1.bf16.msra.mxu0 0
    %298 = vmatprep.subr.bf16.mxu0 0
    %299 = vmatpush1.bf16.msra.mxu0 0
    %300 = vmatprep.subr.bf16.mxu0 0
    %301 = vmatpush1.bf16.msra.mxu0 0
    %302 = vmatprep.mubr.bf16.mxu0 0
    %303 = vmatmul.mubr.bf16.gmra.mrb[0].mxu0 %v49
    %v304 = vpop.f32.mrb[0].mxu0
    %v305 = vadd.f32 %v95, %v304
    %v306 = vpop.f32.mrb[0].mxu0
    %v307 = vpop.f32.mrb[0].mxu0
    %v308 = vadd.f32 %v95, %v307
    %v309 = vpop.f32.mrb[0].mxu0
    %310 = vdwg.mxu0
    %v311 = vpack.c.bf16 %v266, %v262
    %v312 = vpack.c.bf16 %v268, %v264
    %v313 = vpack.c.bf16 %v308, %v305
    %v317 = vunpack.c.l.b16 %v311
    %v318 = vunpack.c.l.b16 %v312
    %v319 = vunpack.c.l.b16 %v313
    %v320 = vunpack.c.h.b16 %v311
    %v321 = vunpack.c.h.b16 %v312
    %v322 = vunpack.c.h.b16 %v313
    %v323 = vpack.c.b16 %v318, %v317
    %v324 = vpack.c.b16 %v319, %v319
    %v325 = vpack.c.b16 %v321, %v320
    %v326 = vpack.c.b16 %v322, %v322
    %331 = vst [vmem:[#allocation7] sm:$0xff] %v323
    %332 = vst [vmem:[#allocation7 + $0x8] sm:$0xf] %v324
    %333 = vst [vmem:[#allocation7 + $0xc] sm:$0xff] %v325
    %334 = vst [vmem:[#allocation7 + $0x14] sm:$0xf] %v326
    %s335 = smul.u32 0, 16
    %v336 = vlaneseq
    %v337 = vshrl.u32 %v336, 7
    %v338 = vadd.s32 %v337, 8
    %v339 = vstv %s335
    %v340 = vadd.s32 %v339, %v337
    %v341 = vadd.s32 %v339, %v338
    %vm342 = vcmp.lt.s32.totalorder %v340, 8
    %vm343 = vcmp.lt.s32.totalorder %v341, 8
    %v344 = vsel %vm342, %v262, 0.0
    %v345 = vsel %vm342, %v264, 0.0
    %v346 = vsel %vm342, %v305, 0.0
    %v347 = vsel %vm343, %v266, 0.0
    %v348 = vsel %vm343, %v268, 0.0
    %v349 = vsel %vm343, %v308, 0.0
    %350 = vst [vmem:[#allocation8] sm:$0xff] 0.0
    %351 = vst [vmem:[#allocation8 + $0x8] sm:$0xff] 0.0
    %352 = vst [vmem:[#allocation8 + $0x10] sm:$0xff] 0.0
    %v353 = vadd.f32 %v344, %v347
    %v354 = vrot.slane %v353, 4
    %v355 = vadd.f32 %v353, %v354
    %v356 = vrot.slane %v355, 2
    %v357 = vadd.f32 %v355, %v356
    %v358 = vrot.slane %v357, 1
    %v359 = vadd.f32 %v357, %v358
    %v360 = vadd.f32 %v345, %v348
    %v361 = vrot.slane %v360, 4
    %v362 = vadd.f32 %v360, %v361
    %v363 = vrot.slane %v362, 2
    %v364 = vadd.f32 %v362, %v363
    %v365 = vrot.slane %v364, 1
    %v366 = vadd.f32 %v364, %v365
    %v367 = vadd.f32 %v346, %v349
    %v368 = vrot.slane %v367, 4
    %v369 = vadd.f32 %v367, %v368
    %v370 = vrot.slane %v369, 2
    %v371 = vadd.f32 %v369, %v370
    %v372 = vrot.slane %v371, 1
    %v373 = vadd.f32 %v371, %v372
    %v377 = vcombine.low %v359, %v366
    %v379 = vunpack.c.l.s4 1966171168
    %v380 = vunpack.c.0.s8 %v379
    %v381 = vlaneseq
    %v382 = vshrl.u32 %v381, 7
    %v383 = vsub.s32 %v380, %v382
    %v384 = vrot.slane %v377, %v383
    %v386 = vunpack.c.l.s4 1966171168
    %v387 = vunpack.c.0.s8 %v386
    %v388 = vlaneseq
    %v389 = vshrl.u32 %v388, 7
    %v390 = vsub.s32 %v387, %v389
    %v391 = vrot.slane %v373, %v390
    %v392 = vcombine.low %v384, %v391
    %v394 = vunpack.c.l.s4 1966171168
    %v395 = vunpack.c.0.s8 %v394
    %v396 = vlaneseq
    %v397 = vshrl.u32 %v396, 7
    %v398 = vsub.s32 %v395, %v397
    %v399 = vrot.slane %v392, %v398
    %v401 = vlaneseq
    %vm402 = vcmp.ge.s32.totalorder %v401, 0
    %vm403 = vcmp.lt.s32.totalorder %v401, 384
    %vm404 = vmand %vm402, %vm403
    %405 = vst.msk [vmem:[#allocation8] ss:$8 sm:$0x7] %vm404, %v399
    %406 = vst.msk [vmem:[#allocation8] ss:$8 sm:$0x0] %vm404, %v399
    %v407 = vmul.f32 %v344, %v344
    %v408 = vmul.f32 %v345, %v345
    %v409 = vmul.f32 %v346, %v346
    %v410 = vmul.f32 %v347, %v347
    %v411 = vmul.f32 %v348, %v348
    %v412 = vmul.f32 %v349, %v349
    %v413 = vadd.f32 %v407, %v410
    %v414 = vrot.slane %v413, 4
    %v415 = vadd.f32 %v413, %v414
    %v416 = vrot.slane %v415, 2
    %v417 = vadd.f32 %v415, %v416
    %v418 = vrot.slane %v417, 1
    %v419 = vadd.f32 %v417, %v418
    %v420 = vadd.f32 %v408, %v411
    %v421 = vrot.slane %v420, 4
    %v422 = vadd.f32 %v420, %v421
    %v423 = vrot.slane %v422, 2
    %v424 = vadd.f32 %v422, %v423
    %v425 = vrot.slane %v424, 1
    %v426 = vadd.f32 %v424, %v425
    %v427 = vadd.f32 %v409, %v412
    %v428 = vrot.slane %v427, 4
    %v429 = vadd.f32 %v427, %v428
    %v430 = vrot.slane %v429, 2
    %v431 = vadd.f32 %v429, %v430
    %v432 = vrot.slane %v431, 1
    %v433 = vadd.f32 %v431, %v432
    %v437 = vcombine.low %v419, %v426
    %v439 = vunpack.c.l.s4 1966171168
    %v440 = vunpack.c.0.s8 %v439
    %v441 = vlaneseq
    %v442 = vshrl.u32 %v441, 7
    %v443 = vsub.s32 %v440, %v442
    %v444 = vrot.slane %v437, %v443
    %v446 = vunpack.c.l.s4 1966171168
    %v447 = vunpack.c.0.s8 %v446
    %v448 = vlaneseq
    %v449 = vshrl.u32 %v448, 7
    %v450 = vsub.s32 %v447, %v449
    %v451 = vrot.slane %v433, %v450
    %v452 = vcombine.low %v444, %v451
    %v454 = vunpack.c.l.s4 1966171168
    %v455 = vunpack.c.0.s8 %v454
    %v456 = vlaneseq
    %v457 = vshrl.u32 %v456, 7
    %v458 = vsub.s32 %v455, %v457
    %v459 = vrot.slane %v452, %v458
    %s461 = scalar_lea.vmem [#allocation8], 1
    %462 = vst.msk [vmem:[%s461] ss:$8 sm:$0x7] %vm404, %v459
    %463 = vst.msk [vmem:[%s461] ss:$8 sm:$0x0] %vm404, %v459
    // Predicated region
    $region22: #{tpu_custom_call.1} parent=1 // pred_check
      _
    $region23: #{tpu_custom_call.1} parent=1 // pred_check_branch
      %465 = sbr.rel (0) target = $region25
    $region24: #{tpu_custom_call.1} parent=1 // pred_region
      %s467 = ssub.s32 384, 384
      %468 = vsyncadd [#allocation4], %s467
      %s469 = sshll.u32 [#allocation7], 4
      %s470 = int_to_ptr.vmem [resolvable:$true] %s469
      %475 = dma.vmem_to_hbm [thread:$0]  %s470, 384, %s3, [#allocation4], 192, 192, 12
    $region25: #{tpu_custom_call.1} parent=1 // pred_fallthru
      _
    // Predicated region
    $region26: #{tpu_custom_call.1} parent=1 // pred_check
      _
    $region27: #{tpu_custom_call.1} parent=1 // pred_check_branch
      %477 = sbr.rel (0) target = $region29
    $region28: #{tpu_custom_call.1} parent=1 // pred_region
      %s479 = ssub.s32 384, 384
      %480 = vsyncadd [#allocation9], %s479
      %s482 = sshll.u32 [#allocation8], 4
      %s483 = int_to_ptr.vmem [resolvable:$true] %s482
      %485 = dma.vmem_to_hbm [thread:$0]  %s483, 384, %s4, [#allocation9]
    $region29: #{tpu_custom_call.1} parent=1 // pred_fallthru
      _
    // Predicated region
    $region30: #{tpu_custom_call.1} parent=1 // pred_check
      _
    $region31: #{tpu_custom_call.1} parent=1 // pred_check_branch
      %487 = sbr.rel (0) target = $region33
    $region32: #{tpu_custom_call.1} parent=1 // pred_region
      %488 = dma.done [#allocation4], 384
    $region33: #{tpu_custom_call.1} parent=1 // pred_fallthru
      _
    // Predicated region
    $region34: #{tpu_custom_call.1} parent=1 // pred_check
      _
    $region35: #{tpu_custom_call.1} parent=1 // pred_check_branch
      %490 = sbr.rel (0) target = $region37
    $region36: #{tpu_custom_call.1} parent=1 // pred_region
      %491 = dma.done [#allocation9], 384
    $region37: #{tpu_custom_call.1} parent=1 // pred_fallthru
      _
    %492 = vsyncpa [#allocation3], 1
    %493 = vsyncpa [#allocation6], 1
    %494 = vsyncpa [#allocation4], 1
    %495 = vsyncpa [#allocation9], 1

</llo_original>
